<compile_context>
chip_gen: v6e
topology: v6e:2x2x1
jax: 0.10.0
libtpu: 0.0.40
codegen_flags: <defaults>
</compile_context>

<pallas_src>
import functools

import jax
import jax.numpy as jnp
from jax.experimental import pallas as pl
from jax.experimental.pallas import tpu as pltpu

_LANES = 128


def _sacel_kernel(logits_ref, targets_ref, s_ref, ce_ref, *, num_classes):
    # logits_ref / targets_ref : (1, C, T_R, 128) blocks (native dtype)
    # s_ref                    : (1, T_R, 128) f32  -> sum_c logp[tgt[c], :]
    # ce_ref                   : (1, 1, 1, 128) f32 -> per-block soft-CE partial (per lane)
    x = logits_ref[0].astype(jnp.float32)    # (C, T_R, L)
    t = targets_ref[0].astype(jnp.float32)   # (C, T_R, L)

    # log_softmax over the channel axis (leading axis == NCHW dim=1):
    # reductions over axis 0 are plain VPU ops across C vreg sets.
    m = jnp.max(x, axis=0)                                    # (T_R, L)
    sh = x - m[None]                                          # (C, T_R, L)
    lse = jnp.log(jnp.sum(jnp.exp(sh), axis=0))               # (T_R, L)
    # logp = sh - lse   (kept factored; never materialized as (C,T_R,L))

    # Soft-label cross-entropy partial, kept per lane (final lane reduction
    # happens outside the kernel):
    #   sum_{c,row} t*(sh - lse) = sum_{c,row} t*sh - sum_{row} lse*(sum_c t)
    t_sum = jnp.sum(t, axis=0)                                # (T_R, L)
    ce_rows = jnp.sum(t * sh, axis=0) - lse * t_sum           # (T_R, L)
    ce_ref[0, 0] = jnp.sum(ce_rows, axis=0, keepdims=True)    # (1, L)

    # gather(logp, targets, dim=1).sum(1) via the count formulation
    # (valid indices in [0, C), so sum_k cnt_k == C):
    #   s = sum_k cnt_k * (sh[k] - lse) = sum_k cnt_k * sh[k] - C * lse
    # (truncating int cast matches .to(torch.long) for non-negative values)
    tidx = t.astype(jnp.int32)
    s = jnp.zeros(lse.shape, jnp.float32)
    for k in range(num_classes):  # C is small & static: fully unrolled
        cnt = jnp.sum((tidx == k).astype(jnp.float32), axis=0)
        s = s + cnt * sh[k]
    s_ref[0] = s - jnp.float32(num_classes) * lse


def shape_aware_cross_entropy_loss(logits, targets):
    """Pallas implementation of ShapeAwareCrossEntropyLoss.forward."""
    N, C, H, W = targets.shape
    HW = H * W

    # Row tiling: pack HW -> (R, 128) lane-dense rows; tile rows so each input
    # block stays around ~2 MiB of f32 compute data.
    per_block_budget = 2 * 1024 * 1024
    t_max = max(8, (per_block_budget // (C * _LANES * 4)) // 8 * 8)

    r_needed = -(-HW // _LANES)  # cdiv
    if r_needed <= t_max:
        t_r, nr = r_needed, 1
    else:
        t_r = t_max
        nr = -(-r_needed // t_r)
    R = nr * t_r
    hw_pad = R * _LANES

    logits3 = logits.reshape(N, C, HW)
    targets3 = targets.reshape(N, C, HW)
    if hw_pad != HW:
        pad = ((0, 0), (0, 0), (0, hw_pad - HW))
        # Padded pixels have target == 0 -> contribute 0 to the CE mean;
        # their (meaningless) per-pixel sums are sliced off below.
        logits3 = jnp.pad(logits3, pad)
        targets3 = jnp.pad(targets3, pad)
    logits4 = logits3.reshape(N, C, R, _LANES)
    targets4 = targets3.reshape(N, C, R, _LANES)

    kernel = functools.partial(_sacel_kernel, num_classes=C)

    s_out, ce_parts = pl.pallas_call(
        kernel,
        out_shape=(
            jax.ShapeDtypeStruct((N, R, _LANES), jnp.float32),
            jax.ShapeDtypeStruct((N, nr, 1, _LANES), jnp.float32),
        ),
        grid_spec=pltpu.PrefetchScalarGridSpec(
            num_scalar_prefetch=0,
            grid=(N, nr),
            in_specs=[
                pl.BlockSpec((1, C, t_r, _LANES), lambda n, r: (n, 0, r, 0)),
                pl.BlockSpec((1, C, t_r, _LANES), lambda n, r: (n, 0, r, 0)),
            ],
            out_specs=[
                pl.BlockSpec((1, t_r, _LANES), lambda n, r: (n, r, 0)),
                pl.BlockSpec((1, 1, 1, _LANES), lambda n, r: (n, r, 0, 0)),
            ],
        ),
        compiler_params=pltpu.CompilerParams(
            dimension_semantics=("parallel", "parallel"),
            vmem_limit_bytes=32 * 1024 * 1024,
        ),
    )(logits4, targets4)

    # Final combine (cheap XLA elementwise):
    #   ce  = mean over N*HW of -(sum_c targets * logp)
    #   out = -s * ce
    ce = -jnp.sum(ce_parts) / jnp.float32(N * HW)
    s = s_out.reshape(N, hw_pad)[:, :HW]
    return (-s * ce).reshape(N, H, W)


def _reference(logits, targets):
    """Pure-JAX reference mirroring the PyTorch forward."""
    logits = logits.astype(jnp.float32)
    targets = targets.astype(jnp.float32)
    logp = jax.nn.log_softmax(logits, axis=1)                          # (N,C,H,W)
    gathered = jnp.take_along_axis(logp, targets.astype(jnp.int32), axis=1)
    s = gathered.sum(axis=1)                                           # (N,H,W)
    ce = -(targets * logp).sum(axis=1).mean()                          # soft-label CE
    return -s * ce


if __name__ == "__main__":
    key = jax.random.PRNGKey(0)
    k1, k2 = jax.random.split(key)
    N, C, H, W = 2, 4, 16, 16

    logits = jax.random.normal(k1, (N, C, H, W), dtype=jnp.float32)
    # Float-valued class indices in [0, C): valid both as gather indices after
    # the long() cast and as (unnormalized) soft labels for F.cross_entropy.
    targets = jax.random.randint(k2, (N, C, H, W), 0, C).astype(jnp.float32)

    out = shape_aware_cross_entropy_loss(logits, targets)
    out = jax.block_until_ready(out)

    ref = _reference(logits, targets)
    assert out.shape == (N, H, W), out.shape
    assert jnp.allclose(out, ref, rtol=1e-4, atol=1e-4), (out, ref)

    print("KERNEL_OK")
</pallas_src>

<mosaic_0001>
module attributes {stable_mosaic.version = 11 : i64} {
  func.func @_sacel_kernel(%arg0: i32, %arg1: i32, %arg2: memref<1x4x2x128xf32, #tpu.memory_space<vmem>>, %arg3: memref<1x4x2x128xf32, #tpu.memory_space<vmem>>, %arg4: memref<1x2x128xf32, #tpu.memory_space<vmem>>, %arg5: memref<1x1x1x128xf32, #tpu.memory_space<vmem>>) attributes {dimension_semantics = [#tpu.dimension_semantics<parallel>, #tpu.dimension_semantics<parallel>], iteration_bounds = array<i64: 2, 1>, scalar_prefetch = 0 : i64, scratch_operands = 0 : i64, tpu.core_type = #tpu.core_type<tc>, window_params = [{transform_indices = @transform_0, window_bounds = array<i64: 1, 4, 2, 128>}, {transform_indices = @transform_1, window_bounds = array<i64: 1, 4, 2, 128>}, {transform_indices = @transform_2, window_bounds = array<i64: 1, 2, 128>}, {transform_indices = @transform_3, window_bounds = array<i64: 1, 1, 1, 128>}]} {
    %c0 = arith.constant 0 : index
    %c0_0 = arith.constant 0 : index
    %c0_1 = arith.constant 0 : index
    %c0_2 = arith.constant 0 : index
    %0 = vector.load %arg2[%c0, %c0_0, %c0_1, %c0_2] : memref<1x4x2x128xf32, #tpu.memory_space<vmem>>, vector<1x4x2x128xf32>
    %1 = vector.shape_cast %0 : vector<1x4x2x128xf32> to vector<4x2x128xf32>
    %c0_3 = arith.constant 0 : index
    %c0_4 = arith.constant 0 : index
    %c0_5 = arith.constant 0 : index
    %c0_6 = arith.constant 0 : index
    %2 = vector.load %arg3[%c0_3, %c0_4, %c0_5, %c0_6] : memref<1x4x2x128xf32, #tpu.memory_space<vmem>>, vector<1x4x2x128xf32>
    %3 = vector.shape_cast %2 : vector<1x4x2x128xf32> to vector<4x2x128xf32>
    %cst = arith.constant dense<0xFF800000> : vector<2x128xf32>
    %4 = vector.multi_reduction <maximumf>, %1, %cst [0] : vector<4x2x128xf32> to vector<2x128xf32>
    %5 = vector.shape_cast %4 : vector<2x128xf32> to vector<1x2x128xf32>
    %6 = vector.broadcast %5 : vector<1x2x128xf32> to vector<4x2x128xf32>
    %7 = arith.subf %1, %6 : vector<4x2x128xf32>
    %8 = math.exp %7 : vector<4x2x128xf32>
    %cst_7 = arith.constant dense<0.000000e+00> : vector<2x128xf32>
    %9 = vector.multi_reduction <add>, %8, %cst_7 [0] : vector<4x2x128xf32> to vector<2x128xf32>
    %10 = math.log %9 : vector<2x128xf32>
    %cst_8 = arith.constant dense<0.000000e+00> : vector<2x128xf32>
    %11 = vector.multi_reduction <add>, %3, %cst_8 [0] : vector<4x2x128xf32> to vector<2x128xf32>
    %12 = arith.mulf %3, %7 : vector<4x2x128xf32>
    %cst_9 = arith.constant dense<0.000000e+00> : vector<2x128xf32>
    %13 = vector.multi_reduction <add>, %12, %cst_9 [0] : vector<4x2x128xf32> to vector<2x128xf32>
    %14 = arith.mulf %10, %11 : vector<2x128xf32>
    %15 = arith.subf %13, %14 : vector<2x128xf32>
    %cst_10 = arith.constant dense<0.000000e+00> : vector<128xf32>
    %16 = vector.multi_reduction <add>, %15, %cst_10 [0] : vector<2x128xf32> to vector<128xf32>
    %17 = vector.shape_cast %16 : vector<128xf32> to vector<1x128xf32>
    %c0_11 = arith.constant 0 : index
    %c0_12 = arith.constant 0 : index
    %c0_13 = arith.constant 0 : index
    %c0_14 = arith.constant 0 : index
    %18 = vector.load %arg5[%c0_11, %c0_12, %c0_13, %c0_14] : memref<1x1x1x128xf32, #tpu.memory_space<vmem>>, vector<1x1x1x128xf32>
    %19 = vector.shape_cast %18 : vector<1x1x1x128xf32> to vector<1x128xf32>
    %20 = vector.shape_cast %17 : vector<1x128xf32> to vector<1x1x1x128xf32>
    tpu.vector_store %arg5[%c0_11, %c0_12, %c0_13, %c0_14], %20 {strides = array<i32>} : memref<1x1x1x128xf32, #tpu.memory_space<vmem>>, vector<1x1x1x128xf32>,
    %21 = arith.fptosi %3 : vector<4x2x128xf32> to vector<4x2x128xi32>
    %cst_15 = arith.constant 0.000000e+00 : f32
    %22 = vector.broadcast %cst_15 : f32 to vector<2x128xf32>
    %c0_i32 = arith.constant 0 : i32
    %23 = vector.broadcast %c0_i32 : i32 to vector<4x2x128xi32>
    %24 = arith.cmpi eq, %21, %23 : vector<4x2x128xi32>
    %25 = arith.extui %24 : vector<4x2x128xi1> to vector<4x2x128xi32>
    %26 = arith.sitofp %25 : vector<4x2x128xi32> to vector<4x2x128xf32>
    %cst_16 = arith.constant dense<0.000000e+00> : vector<2x128xf32>
    %27 = vector.multi_reduction <add>, %26, %cst_16 [0] : vector<4x2x128xf32> to vector<2x128xf32>
    %28 = vector.extract_strided_slice %7 {offsets = [0, 0, 0], sizes = [1, 2, 128], strides = [1, 1, 1]} : vector<4x2x128xf32> to vector<1x2x128xf32>
    %29 = vector.shape_cast %28 : vector<1x2x128xf32> to vector<2x128xf32>
    %30 = arith.mulf %27, %29 : vector<2x128xf32>
    %31 = arith.addf %22, %30 : vector<2x128xf32>
    %c1_i32 = arith.constant 1 : i32
    %32 = vector.broadcast %c1_i32 : i32 to vector<4x2x128xi32>
    %33 = arith.cmpi eq, %21, %32 : vector<4x2x128xi32>
    %34 = arith.extui %33 : vector<4x2x128xi1> to vector<4x2x128xi32>
    %35 = arith.sitofp %34 : vector<4x2x128xi32> to vector<4x2x128xf32>
    %cst_17 = arith.constant dense<0.000000e+00> : vector<2x128xf32>
    %36 = vector.multi_reduction <add>, %35, %cst_17 [0] : vector<4x2x128xf32> to vector<2x128xf32>
    %37 = vector.extract_strided_slice %7 {offsets = [1, 0, 0], sizes = [1, 2, 128], strides = [1, 1, 1]} : vector<4x2x128xf32> to vector<1x2x128xf32>
    %38 = vector.shape_cast %37 : vector<1x2x128xf32> to vector<2x128xf32>
    %39 = arith.mulf %36, %38 : vector<2x128xf32>
    %40 = arith.addf %31, %39 : vector<2x128xf32>
    %c2_i32 = arith.constant 2 : i32
    %41 = vector.broadcast %c2_i32 : i32 to vector<4x2x128xi32>
    %42 = arith.cmpi eq, %21, %41 : vector<4x2x128xi32>
    %43 = arith.extui %42 : vector<4x2x128xi1> to vector<4x2x128xi32>
    %44 = arith.sitofp %43 : vector<4x2x128xi32> to vector<4x2x128xf32>
    %cst_18 = arith.constant dense<0.000000e+00> : vector<2x128xf32>
    %45 = vector.multi_reduction <add>, %44, %cst_18 [0] : vector<4x2x128xf32> to vector<2x128xf32>
    %46 = vector.extract_strided_slice %7 {offsets = [2, 0, 0], sizes = [1, 2, 128], strides = [1, 1, 1]} : vector<4x2x128xf32> to vector<1x2x128xf32>
    %47 = vector.shape_cast %46 : vector<1x2x128xf32> to vector<2x128xf32>
    %48 = arith.mulf %45, %47 : vector<2x128xf32>
    %49 = arith.addf %40, %48 : vector<2x128xf32>
    %c3_i32 = arith.constant 3 : i32
    %50 = vector.broadcast %c3_i32 : i32 to vector<4x2x128xi32>
    %51 = arith.cmpi eq, %21, %50 : vector<4x2x128xi32>
    %52 = arith.extui %51 : vector<4x2x128xi1> to vector<4x2x128xi32>
    %53 = arith.sitofp %52 : vector<4x2x128xi32> to vector<4x2x128xf32>
    %cst_19 = arith.constant dense<0.000000e+00> : vector<2x128xf32>
    %54 = vector.multi_reduction <add>, %53, %cst_19 [0] : vector<4x2x128xf32> to vector<2x128xf32>
    %55 = vector.extract_strided_slice %7 {offsets = [3, 0, 0], sizes = [1, 2, 128], strides = [1, 1, 1]} : vector<4x2x128xf32> to vector<1x2x128xf32>
    %56 = vector.shape_cast %55 : vector<1x2x128xf32> to vector<2x128xf32>
    %57 = arith.mulf %54, %56 : vector<2x128xf32>
    %58 = arith.addf %49, %57 : vector<2x128xf32>
    %cst_20 = arith.constant 4.000000e+00 : f32
    %59 = vector.broadcast %cst_20 : f32 to vector<2x128xf32>
    %60 = arith.mulf %59, %10 : vector<2x128xf32>
    %61 = arith.subf %58, %60 : vector<2x128xf32>
    %c0_21 = arith.constant 0 : index
    %c0_22 = arith.constant 0 : index
    %c0_23 = arith.constant 0 : index
    %62 = vector.load %arg4[%c0_21, %c0_22, %c0_23] : memref<1x2x128xf32, #tpu.memory_space<vmem>>, vector<1x2x128xf32>
    %63 = vector.shape_cast %62 : vector<1x2x128xf32> to vector<2x128xf32>
    %64 = vector.shape_cast %61 : vector<2x128xf32> to vector<1x2x128xf32>
    tpu.vector_store %arg4[%c0_21, %c0_22, %c0_23], %64 {strides = array<i32>} : memref<1x2x128xf32, #tpu.memory_space<vmem>>, vector<1x2x128xf32>,
    return
  }
  func.func @transform_0(%arg0: i32, %arg1: i32) -> (i32, i32, i32, i32) {
    %c0_i32 = arith.constant 0 : i32
    %c0_i32_0 = arith.constant 0 : i32
    %c0_i32_1 = arith.constant 0 : i32
    return %arg0, %c0_i32, %arg1, %c0_i32_0 : i32, i32, i32, i32
  }
  func.func @transform_1(%arg0: i32, %arg1: i32) -> (i32, i32, i32, i32) {
    %c0_i32 = arith.constant 0 : i32
    %c0_i32_0 = arith.constant 0 : i32
    %c0_i32_1 = arith.constant 0 : i32
    return %arg0, %c0_i32, %arg1, %c0_i32_0 : i32, i32, i32, i32
  }
  func.func @transform_2(%arg0: i32, %arg1: i32) -> (i32, i32, i32) {
    %c0_i32 = arith.constant 0 : i32
    %c0_i32_0 = arith.constant 0 : i32
    return %arg0, %arg1, %c0_i32 : i32, i32, i32
  }
  func.func @transform_3(%arg0: i32, %arg1: i32) -> (i32, i32, i32, i32) {
    %c0_i32 = arith.constant 0 : i32
    %c0_i32_0 = arith.constant 0 : i32
    %c0_i32_1 = arith.constant 0 : i32
    return %arg0, %arg1, %c0_i32, %c0_i32_0 : i32, i32, i32, i32
  }
}

</mosaic_0001>

<llo_original>
// kernel: tpu_custom_call.1
$region0: #{tpu_custom_call.1}
  #allocation0 [shape = 'u32[]', space=smem, size = 0x4, offset = 0x4, fixed_abs, tag = 'smem constant byte address 0x4 - core index']
  #allocation1 [shape = 'u32[144,128]{1,0:T(1,128)}', space=vmem, size = 0x12000, scoped, tag = 'internal scratch']
  %s0 = inlined_call_operand.hbm [shape: f32[2,4,2,128], index: 0, kind: input, shape index: {}]
  %s1 = inlined_call_operand.hbm [shape: f32[2,4,2,128], index: 1, kind: input, shape index: {}]
  %s2 = inlined_call_operand.hbm [shape: f32[2,2,128], index: 2, kind: output, shape index: {0}]
  %s3 = inlined_call_operand.hbm [shape: f32[2,1,1,128], index: 3, kind: output, shape index: {1}]
  %4 = xla_tuple %s2, %s3
  %s5 = sld [smem:[#allocation0]]
  $region57: #{tpu_custom_call.1} parent=0
    _
  %s7 = ssub.s32 1, %s5
  %s8 = scalar_select 0, %s7, %s5
  $region1: #{tpu_custom_call.1} parent=0
    #allocation2 [shape = 'u8[8192]{0}', space=vmem, size = 0x2000, scoped, tag = 'input window, operand 0']
    #allocation3 [shape = 's32[2]{0}', space=sflag, size = 0x8, scoped, tag = 'scoped memory for tpu_custom_call.1']
    #allocation4 [shape = 's32[2]{0}', space=sflag, size = 0x8, scoped, tag = 'scoped memory for tpu_custom_call.1']
    #allocation5 [shape = 'u8[8192]{0}', space=vmem, size = 0x2000, scoped, tag = 'input window, operand 1']
    #allocation6 [shape = 's32[2]{0}', space=sflag, size = 0x8, scoped, tag = 'scoped memory for tpu_custom_call.1']
    #allocation7 [shape = 'u8[2048]{0}', space=vmem, size = 0x800, scoped, tag = 'output window, operand 0']
    #allocation8 [shape = 'u8[1024]{0}', space=vmem, size = 0x400, scoped, tag = 'output window, operand 1']
    #allocation9 [shape = 's32[2]{0}', space=sflag, size = 0x8, scoped, tag = 'scoped memory for tpu_custom_call.1']
    %9 = vsyncpa [#allocation3], 0
    %s10 = scalar_lea.sflag [#allocation3], 1
    %11 = vsyncpa %s10, 0
    %12 = vsyncpa [#allocation6], 0
    %s13 = scalar_lea.sflag [#allocation6], 1
    %14 = vsyncpa %s13, 0
    %15 = vsyncpa [#allocation4], 0
    %s16 = scalar_lea.sflag [#allocation4], 1
    %17 = vsyncpa %s16, 0
    %18 = vsyncpa [#allocation9], 0
    %s19 = scalar_lea.sflag [#allocation9], 1
    %20 = vsyncpa %s19, 0
    loop: start=0, step=1, limit=4
    $region2: #{tpu_custom_call.1} parent=1 // loop_pre_header
      _
    $region3: #{tpu_custom_call.1} parent=1 // loop_header
      %s22 = sphi 0, %s26
      %p23 = scmp.ge.s32.totalorder %s22, 4
      %s29 = sphi 0, %s41
      %s30 = sphi 0, %s37
      %s31 = sphi 0, %s29
      %s32 = sphi 0, %s30
      %s33 = sphi 0, %s31
      %s34 = sphi 0, %s32
      %s46 = sphi 0, %s48
      %s49 = sphi 0, %s46
      %s50 = sphi 0, %s49
      %s66 = sphi 0, %s50
      %s74 = sphi 0, %s76
      %s77 = sphi 0, %s74
      %s78 = sphi 0, %s77
      %s94 = sphi 0, %s78
      %s102 = sphi 0, %s104
      %s105 = sphi 0, %s102
      %s106 = sphi 0, %s105
      %s122 = sphi 0, %s106
      %s130 = sphi 0, %s132
      %s133 = sphi 0, %s130
      %s134 = sphi 0, %s133
      %s150 = sphi 0, %s134
    $region4: #{tpu_custom_call.1} parent=1 // loop_header_branch
      %25 = sbr.rel (%p23) target = $region8
    $region5: #{tpu_custom_call.1} parent=1 // loop_body
      %s27 = ssub.s32 %s22, 1
      %s28 = ssub.s32 %s22, 2
      %s35 = sadd.s32 1, %s30
      %p36 = scmp.ge.s32.totalorder %s35, 1
      %s37 = scalar_select %p36, 0, %s35
      %s38 = sadd.s32 1, %s29
      %s39 = scalar_select %p36, %s38, %s29
      %p40 = scmp.ge.s32.totalorder %s39, 2
      %s41 = scalar_select %p40, 0, %s39
      %s42 = ssub.s32 %s29, %s41
      %s43 = ssub.s32 %s30, %s37
      %s44 = sor.u32 %s42, %s43
      %p45 = scmp.eq.s32.totalorder %s44, 0
      %s47 = sadd.s32 %s46, 1
      %s48 = scalar_select %p45, %s46, %s47
      %p51 = pneg %p45
      %p52 = scmp.eq.s32.totalorder %s22, 1
      %p53 = por %p51, %p52
      %p54 = scmp.ne.s32.totalorder %s46, %s49
      %p55 = scmp.eq.s32.totalorder %s22, 0
      %p56 = por %p54, %p55
      %p57 = scmp.ne.s32.totalorder %s46, %s49
      %p58 = scmp.eq.s32.totalorder %s27, 1
      %p59 = por %p57, %p58
      %p60 = scmp.ne.s32.totalorder %s49, %s50
      %p61 = scmp.eq.s32.totalorder %s27, 0
      %p62 = por %p60, %p61
      %p63 = scmp.ne.s32.totalorder %s49, %s50
      %p64 = scmp.eq.s32.totalorder %s28, 1
      %p65 = por %p63, %p64
      %p67 = scmp.ne.s32.totalorder %s50, %s66
      %p68 = scmp.eq.s32.totalorder %s28, 0
      %p69 = por %p67, %p68
      %s70 = ssub.s32 %s29, %s41
      %s71 = ssub.s32 %s30, %s37
      %s72 = sor.u32 %s70, %s71
      %p73 = scmp.eq.s32.totalorder %s72, 0
      %s75 = sadd.s32 %s74, 1
      %s76 = scalar_select %p73, %s74, %s75
      %p79 = pneg %p73
      %p80 = scmp.eq.s32.totalorder %s22, 1
      %p81 = por %p79, %p80
      %p82 = scmp.ne.s32.totalorder %s74, %s77
      %p83 = scmp.eq.s32.totalorder %s22, 0
      %p84 = por %p82, %p83
      %p85 = scmp.ne.s32.totalorder %s74, %s77
      %p86 = scmp.eq.s32.totalorder %s27, 1
      %p87 = por %p85, %p86
      %p88 = scmp.ne.s32.totalorder %s77, %s78
      %p89 = scmp.eq.s32.totalorder %s27, 0
      %p90 = por %p88, %p89
      %p91 = scmp.ne.s32.totalorder %s77, %s78
      %p92 = scmp.eq.s32.totalorder %s28, 1
      %p93 = por %p91, %p92
      %p95 = scmp.ne.s32.totalorder %s78, %s94
      %p96 = scmp.eq.s32.totalorder %s28, 0
      %p97 = por %p95, %p96
      %s98 = ssub.s32 %s29, %s41
      %s99 = ssub.s32 %s30, %s37
      %s100 = sor.u32 %s98, %s99
      %p101 = scmp.eq.s32.totalorder %s100, 0
      %s103 = sadd.s32 %s102, 1
      %s104 = scalar_select %p101, %s102, %s103
      %p107 = pneg %p101
      %p108 = scmp.eq.s32.totalorder %s22, 1
      %p109 = por %p107, %p108
      %p110 = scmp.ne.s32.totalorder %s102, %s105
      %p111 = scmp.eq.s32.totalorder %s22, 0
      %p112 = por %p110, %p111
      %p113 = scmp.ne.s32.totalorder %s102, %s105
      %p114 = scmp.eq.s32.totalorder %s27, 1
      %p115 = por %p113, %p114
      %p116 = scmp.ne.s32.totalorder %s105, %s106
      %p117 = scmp.eq.s32.totalorder %s27, 0
      %p118 = por %p116, %p117
      %p119 = scmp.ne.s32.totalorder %s105, %s106
      %p120 = scmp.eq.s32.totalorder %s28, 1
      %p121 = por %p119, %p120
      %p123 = scmp.ne.s32.totalorder %s106, %s122
      %p124 = scmp.eq.s32.totalorder %s28, 0
      %p125 = por %p123, %p124
      %s126 = ssub.s32 %s29, %s41
      %s127 = ssub.s32 %s30, %s37
      %s128 = sor.u32 %s126, %s127
      %p129 = scmp.eq.s32.totalorder %s128, 0
      %s131 = sadd.s32 %s130, 1
      %s132 = scalar_select %p129, %s130, %s131
      %p135 = pneg %p129
      %p136 = scmp.eq.s32.totalorder %s22, 1
      %p137 = por %p135, %p136
      %p138 = scmp.ne.s32.totalorder %s130, %s133
      %p139 = scmp.eq.s32.totalorder %s22, 0
      %p140 = por %p138, %p139
      %p141 = scmp.ne.s32.totalorder %s130, %s133
      %p142 = scmp.eq.s32.totalorder %s27, 1
      %p143 = por %p141, %p142
      %p144 = scmp.ne.s32.totalorder %s133, %s134
      %p145 = scmp.eq.s32.totalorder %s27, 0
      %p146 = por %p144, %p145
      %p147 = scmp.ne.s32.totalorder %s133, %s134
      %p148 = scmp.eq.s32.totalorder %s28, 1
      %p149 = por %p147, %p148
      %p151 = scmp.ne.s32.totalorder %s134, %s150
      %p152 = scmp.eq.s32.totalorder %s28, 0
      %p153 = por %p151, %p152
      %p154 = scmp.le.s32.totalorder 1, %s22
      %p155 = scmp.lt.s32.totalorder %s22, 3
      %p156 = pnand %p154, %p155
      %p157 = pneg %p156
      // Predicated region
      $region9: #{tpu_custom_call.1} parent=5 // pred_check
        _
      $region10: #{tpu_custom_call.1} parent=5 // pred_check_branch
        %159 = sbr.rel (%p156) target = $region12
      $region11: #{tpu_custom_call.1} parent=5 // pred_region
        %s160 = ssub.s32 %s22, 1
      $region12: #{tpu_custom_call.1} parent=5 // pred_fallthru
        _
      %p161 = scmp.lt.s32.totalorder %s22, 2
      // Predicated region
      $region13: #{tpu_custom_call.1} parent=5 // pred_check
        %p162 = pneg %p161
      $region14: #{tpu_custom_call.1} parent=5 // pred_check_branch
        %164 = sbr.rel (%p162) target = $region16
      $region15: #{tpu_custom_call.1} parent=5 // pred_region
        // Predicated region
        $region17: #{tpu_custom_call.1} parent=15 // pred_check
          %p165 = pneg %p56
        $region18: #{tpu_custom_call.1} parent=15 // pred_check_branch
          %167 = sbr.rel (%p165) target = $region20
        $region19: #{tpu_custom_call.1} parent=15 // pred_region
          %s168 = sand.u32 %s46, 1
          %s169 = scalar_lea.sflag [#allocation3], %s168
          %s170 = sand.u32 %s46, 1
          %s171 = smul.addr %s170, 8
          %s172 = scalar_lea.vmem [#allocation2], %s171
          %s174 = ssub.s32 128, 128
          %175 = vsyncadd %s169, %s174
          %s176 = smul.addr %s29, 4
          %s177 = sadd.s32 %s30, %s176
          %s178 = smul.addr %s177, 32
          %s179 = scalar_lea.hbm %s0, %s178
          %s180 = sshll.u32 %s172, 4
          %s181 = int_to_ptr.vmem [resolvable:$true] %s180
          %186 = dma.hbm_to_vmem [thread:$0]  %s179, 128, %s181, %s169, 32, 32, 2
        $region20: #{tpu_custom_call.1} parent=15 // pred_fallthru
          _
        // Predicated region
        $region21: #{tpu_custom_call.1} parent=15 // pred_check
          %p187 = pneg %p84
        $region22: #{tpu_custom_call.1} parent=15 // pred_check_branch
          %189 = sbr.rel (%p187) target = $region24
        $region23: #{tpu_custom_call.1} parent=15 // pred_region
          %s190 = sand.u32 %s74, 1
          %s191 = scalar_lea.sflag [#allocation6], %s190
          %s192 = sand.u32 %s74, 1
          %s193 = smul.addr %s192, 8
          %s194 = scalar_lea.vmem [#allocation5], %s193
          %s196 = ssub.s32 128, 128
          %197 = vsyncadd %s191, %s196
          %s198 = smul.addr %s29, 4
          %s199 = sadd.s32 %s30, %s198
          %s200 = smul.addr %s199, 32
          %s201 = scalar_lea.hbm %s1, %s200
          %s202 = sshll.u32 %s194, 4
          %s203 = int_to_ptr.vmem [resolvable:$true] %s202
          %208 = dma.hbm_to_vmem [thread:$0]  %s201, 128, %s203, %s191, 32, 32, 2
        $region24: #{tpu_custom_call.1} parent=15 // pred_fallthru
          _
      $region16: #{tpu_custom_call.1} parent=5 // pred_fallthru
        _
      %p209 = scmp.le.s32.totalorder 1, %s22
      %p210 = scmp.lt.s32.totalorder %s22, 3
      %p211 = pnand %p209, %p210
      %p212 = pneg %p211
      // Predicated region
      $region25: #{tpu_custom_call.1} parent=5 // pred_check
        _
      $region26: #{tpu_custom_call.1} parent=5 // pred_check_branch
        %214 = sbr.rel (%p211) target = $region28
      $region27: #{tpu_custom_call.1} parent=5 // pred_region
        %s215 = ssub.s32 %s22, 1
        %s216 = sand.u32 %s49, 1
        %s217 = scalar_lea.sflag [#allocation3], %s216
        %s218 = sand.u32 %s49, 1
        %s219 = smul.addr %s218, 8
        %s220 = scalar_lea.vmem [#allocation2], %s219
        // Predicated region
        $region29: #{tpu_custom_call.1} parent=27 // pred_check
          %p221 = pneg %p62
        $region30: #{tpu_custom_call.1} parent=27 // pred_check_branch
          %223 = sbr.rel (%p221) target = $region32
        $region31: #{tpu_custom_call.1} parent=27 // pred_region
          %224 = dma.done %s217, 128
        $region32: #{tpu_custom_call.1} parent=27 // pred_fallthru
          _
        %s225 = sand.u32 %s77, 1
        %s226 = scalar_lea.sflag [#allocation6], %s225
        %s227 = sand.u32 %s77, 1
        %s228 = smul.addr %s227, 8
        %s229 = scalar_lea.vmem [#allocation5], %s228
        // Predicated region
        $region33: #{tpu_custom_call.1} parent=27 // pred_check
          %p230 = pneg %p90
        $region34: #{tpu_custom_call.1} parent=27 // pred_check_branch
          %232 = sbr.rel (%p230) target = $region36
        $region35: #{tpu_custom_call.1} parent=27 // pred_region
          %233 = dma.done %s226, 128
        $region36: #{tpu_custom_call.1} parent=27 // pred_fallthru
          _
        %s234 = sand.u32 %s49, 1
        %s235 = scalar_lea.sflag [#allocation3], %s234
        %s236 = sand.u32 %s49, 1
        %s237 = smul.addr %s236, 8
        %s238 = scalar_lea.vmem [#allocation2], %s237
        %p239 = pneg %p62
        %p240 = pneg %p59
        %s241 = sand.u32 %s77, 1
        %s242 = scalar_lea.sflag [#allocation6], %s241
        %s243 = sand.u32 %s77, 1
        %s244 = smul.addr %s243, 8
        %s245 = scalar_lea.vmem [#allocation5], %s244
        %p246 = pneg %p90
        %p247 = pneg %p87
        %p248 = pneg %p118
        %p249 = pneg %p115
        %s250 = sand.u32 %s105, 1
        %s251 = scalar_lea.sflag [#allocation4], %s250
        %s252 = sand.u32 %s105, 1
        %s253 = smul.addr %s252, 2
        %s254 = scalar_lea.vmem [#allocation7], %s253
        %p255 = pneg %p146
        %p256 = pneg %p143
        %s257 = sand.u32 %s133, 1
        %s258 = scalar_lea.sflag [#allocation9], %s257
        %s259 = sand.u32 %s133, 1
        %s260 = scalar_lea.vmem [#allocation8], %s259
        %v261 = vld [vmem:[%s220] sm:$0x3]
        %v262 = vld [vmem:[%s220 + $0x2] sm:$0x3]
        %v263 = vld [vmem:[%s220 + $0x4] sm:$0x3]
        %v264 = vld [vmem:[%s220 + $0x6] sm:$0x3]
        %v265 = vld [vmem:[%s229] sm:$0x3]
        %v266 = vld [vmem:[%s229 + $0x2] sm:$0x3]
        %v267 = vld [vmem:[%s229 + $0x4] sm:$0x3]
        %v268 = vld [vmem:[%s229 + $0x6] sm:$0x3]
        %vm269 = vcmask 1041408
        %v270 = vsel %vm269, %v261, -inf
        %v271 = vsel %vm269, %v262, -inf
        %v272 = vsel %vm269, %v263, -inf
        %v273 = vsel %vm269, %v264, -inf
        %v274 = vmax.f32 %v270, %v271
        %v275 = vmax.f32 %v272, %v273
        %v276 = vmax.f32 %v274, %v275
        %v277 = vsub.f32 %v261, %v276
        %v278 = vsub.f32 %v262, %v276
        %v279 = vsub.f32 %v263, %v276
        %v280 = vsub.f32 %v264, %v276
        %v281 = vmul.f32 %v277, 1.442695
        %v282 = vpow.pop %v281
        %v283 = vmul.f32 %v278, 1.442695
        %v284 = vpow.pop %v283
        %v285 = vmul.f32 %v279, 1.442695
        %v286 = vpow.pop %v285
        %v287 = vmul.f32 %v280, 1.442695
        %v288 = vpow.pop %v287
        %v289 = vsel %vm269, %v282, 0.0
        %v290 = vsel %vm269, %v284, 0.0
        %v291 = vadd.f32 %v289, %v290
        %v292 = vsel %vm269, %v286, 0.0
        %v293 = vadd.f32 %v291, %v292
        %v294 = vsel %vm269, %v288, 0.0
        %v295 = vadd.f32 %v293, %v294
        %v296 = vlog2.pop %v295
        %v297 = vmul.f32 %v296, 0.6931472
        %v298 = vsel %vm269, %v265, 0.0
        %v299 = vsel %vm269, %v266, 0.0
        %v300 = vadd.f32 %v298, %v299
        %v301 = vsel %vm269, %v267, 0.0
        %v302 = vadd.f32 %v300, %v301
        %v303 = vsel %vm269, %v268, 0.0
        %v304 = vadd.f32 %v302, %v303
        %v305 = vmul.f32 %v265, %v277
        %v306 = vmul.f32 %v266, %v278
        %v307 = vmul.f32 %v267, %v279
        %v308 = vmul.f32 %v268, %v280
        %v309 = vsel %vm269, %v305, 0.0
        %v310 = vsel %vm269, %v306, 0.0
        %v311 = vadd.f32 %v309, %v310
        %v312 = vsel %vm269, %v307, 0.0
        %v313 = vadd.f32 %v311, %v312
        %v314 = vsel %vm269, %v308, 0.0
        %v315 = vadd.f32 %v313, %v314
        %v316 = vmul.f32 %v297, %v304
        %v317 = vsub.f32 %v315, %v316
        %v318 = vsel %vm269, %v317, 0.0
        %v319 = vrot.slane %v318, 4
        %v320 = vadd.f32 %v318, %v319
        %v321 = vrot.slane %v320, 2
        %v322 = vadd.f32 %v320, %v321
        %v323 = vrot.slane %v322, 1
        %v324 = vadd.f32 %v322, %v323
        %325 = vst [vmem:[%s260] sm:$0x1] %v324
        %v326 = vcvt.f32.s32.to.zero.pseudo %v265
        %v327 = vcvt.f32.s32.to.zero.pseudo %v266
        %v328 = vcvt.f32.s32.to.zero.pseudo %v267
        %v329 = vcvt.f32.s32.to.zero.pseudo %v268
        %vm330 = vcmp.eq.s32.totalorder %v326, 0
        %vm331 = vcmp.eq.s32.totalorder %v327, 0
        %vm332 = vcmp.eq.s32.totalorder %v328, 0
        %vm333 = vcmp.eq.s32.totalorder %v329, 0
        %v334 = vsel %vm330, 1, 0
        %v335 = vsel %vm331, 1, 0
        %v336 = vsel %vm332, 1, 0
        %v337 = vsel %vm333, 1, 0
        %v338 = vcvt.s32.f32 %v334
        %v339 = vcvt.s32.f32 %v335
        %v340 = vcvt.s32.f32 %v336
        %v341 = vcvt.s32.f32 %v337
        %v342 = vsel %vm269, %v338, 0.0
        %v343 = vsel %vm269, %v339, 0.0
        %v344 = vadd.f32 %v342, %v343
        %v345 = vsel %vm269, %v340, 0.0
        %v346 = vadd.f32 %v344, %v345
        %v347 = vsel %vm269, %v341, 0.0
        %v348 = vadd.f32 %v346, %v347
        %v349 = vmul.f32 %v348, %v277
        %v350 = vadd.f32 %v349, 0.0
        %vm351 = vcmp.eq.s32.totalorder %v326, 1
        %vm352 = vcmp.eq.s32.totalorder %v327, 1
        %vm353 = vcmp.eq.s32.totalorder %v328, 1
        %vm354 = vcmp.eq.s32.totalorder %v329, 1
        %v355 = vsel %vm351, 1, 0
        %v356 = vsel %vm352, 1, 0
        %v357 = vsel %vm353, 1, 0
        %v358 = vsel %vm354, 1, 0
        %v359 = vcvt.s32.f32 %v355
        %v360 = vcvt.s32.f32 %v356
        %v361 = vcvt.s32.f32 %v357
        %v362 = vcvt.s32.f32 %v358
        %v363 = vsel %vm269, %v359, 0.0
        %v364 = vsel %vm269, %v360, 0.0
        %v365 = vadd.f32 %v363, %v364
        %v366 = vsel %vm269, %v361, 0.0
        %v367 = vadd.f32 %v365, %v366
        %v368 = vsel %vm269, %v362, 0.0
        %v369 = vadd.f32 %v367, %v368
        %v370 = vmul.f32 %v369, %v278
        %v371 = vadd.f32 %v350, %v370
        %vm372 = vcmp.eq.s32.totalorder %v326, 2
        %vm373 = vcmp.eq.s32.totalorder %v327, 2
        %vm374 = vcmp.eq.s32.totalorder %v328, 2
        %vm375 = vcmp.eq.s32.totalorder %v329, 2
        %v376 = vsel %vm372, 1, 0
        %v377 = vsel %vm373, 1, 0
        %v378 = vsel %vm374, 1, 0
        %v379 = vsel %vm375, 1, 0
        %v380 = vcvt.s32.f32 %v376
        %v381 = vcvt.s32.f32 %v377
        %v382 = vcvt.s32.f32 %v378
        %v383 = vcvt.s32.f32 %v379
        %v384 = vsel %vm269, %v380, 0.0
        %v385 = vsel %vm269, %v381, 0.0
        %v386 = vadd.f32 %v384, %v385
        %v387 = vsel %vm269, %v382, 0.0
        %v388 = vadd.f32 %v386, %v387
        %v389 = vsel %vm269, %v383, 0.0
        %v390 = vadd.f32 %v388, %v389
        %v391 = vmul.f32 %v390, %v279
        %v392 = vadd.f32 %v371, %v391
        %vm393 = vcmp.eq.s32.totalorder %v326, 3
        %vm394 = vcmp.eq.s32.totalorder %v327, 3
        %vm395 = vcmp.eq.s32.totalorder %v328, 3
        %vm396 = vcmp.eq.s32.totalorder %v329, 3
        %v397 = vsel %vm393, 1, 0
        %v398 = vsel %vm394, 1, 0
        %v399 = vsel %vm395, 1, 0
        %v400 = vsel %vm396, 1, 0
        %v401 = vcvt.s32.f32 %v397
        %v402 = vcvt.s32.f32 %v398
        %v403 = vcvt.s32.f32 %v399
        %v404 = vcvt.s32.f32 %v400
        %v405 = vsel %vm269, %v401, 0.0
        %v406 = vsel %vm269, %v402, 0.0
        %v407 = vadd.f32 %v405, %v406
        %v408 = vsel %vm269, %v403, 0.0
        %v409 = vadd.f32 %v407, %v408
        %v410 = vsel %vm269, %v404, 0.0
        %v411 = vadd.f32 %v409, %v410
        %v412 = vmul.f32 %v411, %v280
        %v413 = vadd.f32 %v392, %v412
        %v414 = vmul.f32 %v297, 4.0
        %v415 = vsub.f32 %v413, %v414
        %416 = vst [vmem:[%s254] sm:$0x3] %v415
        %s417 = sand.u32 %s105, 1
        %s418 = scalar_lea.sflag [#allocation4], %s417
        %s419 = sand.u32 %s105, 1
        %s420 = smul.addr %s419, 2
        %s421 = scalar_lea.vmem [#allocation7], %s420
        %s422 = sand.u32 %s133, 1
        %s423 = scalar_lea.sflag [#allocation9], %s422
        %s424 = sand.u32 %s133, 1
        %s425 = scalar_lea.vmem [#allocation8], %s424
        // Predicated region
        $region37: #{tpu_custom_call.1} parent=27 // pred_check
          %p426 = pneg %p115
        $region38: #{tpu_custom_call.1} parent=27 // pred_check_branch
          %428 = sbr.rel (%p426) target = $region40
        $region39: #{tpu_custom_call.1} parent=27 // pred_region
          %s430 = ssub.s32 32, 32
          %431 = vsyncadd %s418, %s430
          %s432 = sadd.s32 %s32, %s31
          %s433 = smul.addr %s432, 32
          %s434 = scalar_lea.hbm %s2, %s433
          %s436 = sshll.u32 %s421, 4
          %s437 = int_to_ptr.vmem [resolvable:$true] %s436
          %439 = dma.vmem_to_hbm [thread:$0]  %s437, 32, %s434, %s418
        $region40: #{tpu_custom_call.1} parent=27 // pred_fallthru
          _
        // Predicated region
        $region41: #{tpu_custom_call.1} parent=27 // pred_check
          %p440 = pneg %p143
        $region42: #{tpu_custom_call.1} parent=27 // pred_check_branch
          %442 = sbr.rel (%p440) target = $region44
        $region43: #{tpu_custom_call.1} parent=27 // pred_region
          %s444 = ssub.s32 16, 16
          %445 = vsyncadd %s423, %s444
          %s446 = sadd.s32 %s32, %s31
          %s447 = smul.addr %s446, 16
          %s448 = scalar_lea.hbm %s3, %s447
          %s450 = sshll.u32 %s425, 4
          %s451 = int_to_ptr.vmem [resolvable:$true] %s450
          %453 = dma.vmem_to_hbm [thread:$0]  %s451, 16, %s448, %s423
        $region44: #{tpu_custom_call.1} parent=27 // pred_fallthru
          _
      $region28: #{tpu_custom_call.1} parent=5 // pred_fallthru
        _
      %p454 = scmp.le.s32.totalorder 2, %s22
      // Predicated region
      $region45: #{tpu_custom_call.1} parent=5 // pred_check
        %p455 = pneg %p454
      $region46: #{tpu_custom_call.1} parent=5 // pred_check_branch
        %457 = sbr.rel (%p455) target = $region48
      $region47: #{tpu_custom_call.1} parent=5 // pred_region
        %s458 = ssub.s32 %s22, 2
        // Predicated region
        $region49: #{tpu_custom_call.1} parent=47 // pred_check
          %p459 = pneg %p121
        $region50: #{tpu_custom_call.1} parent=47 // pred_check_branch
          %461 = sbr.rel (%p459) target = $region52
        $region51: #{tpu_custom_call.1} parent=47 // pred_region
          %s462 = sand.u32 %s106, 1
          %s463 = scalar_lea.sflag [#allocation4], %s462
          %s464 = sand.u32 %s106, 1
          %s465 = smul.addr %s464, 2
          %s466 = scalar_lea.vmem [#allocation7], %s465
          %467 = dma.done %s463, 32
        $region52: #{tpu_custom_call.1} parent=47 // pred_fallthru
          _
        // Predicated region
        $region53: #{tpu_custom_call.1} parent=47 // pred_check
          %p468 = pneg %p149
        $region54: #{tpu_custom_call.1} parent=47 // pred_check_branch
          %470 = sbr.rel (%p468) target = $region56
        $region55: #{tpu_custom_call.1} parent=47 // pred_region
          %s471 = sand.u32 %s134, 1
          %s472 = scalar_lea.sflag [#allocation9], %s471
          %s473 = sand.u32 %s134, 1
          %s474 = scalar_lea.vmem [#allocation8], %s473
          %475 = dma.done %s472, 16
        $region56: #{tpu_custom_call.1} parent=47 // pred_fallthru
          _
      $region48: #{tpu_custom_call.1} parent=5 // pred_fallthru
        _
    $region6: #{tpu_custom_call.1} parent=1 // loop_footer
      %s26 = sadd.s32 1, %s22
    $region7: #{tpu_custom_call.1} parent=1 // loop_footer_branch
      %21 = sbr.rel target = $region3
    $region8: #{tpu_custom_call.1} parent=1 // loop_exit
      _
    %476 = vsyncpa [#allocation3], 1
    %s477 = scalar_lea.sflag [#allocation3], 1
    %478 = vsyncpa %s477, 1
    %479 = vsyncpa [#allocation6], 1
    %s480 = scalar_lea.sflag [#allocation6], 1
    %481 = vsyncpa %s480, 1
    %482 = vsyncpa [#allocation4], 1
    %s483 = scalar_lea.sflag [#allocation4], 1
    %484 = vsyncpa %s483, 1
    %485 = vsyncpa [#allocation9], 1
    %s486 = scalar_lea.sflag [#allocation9], 1
    %487 = vsyncpa %s486, 1

</llo_original>
